<compile_context>
chip_gen: v5e
topology: v5e:2x2
jax: 0.10.0
libtpu: 0.0.40
codegen_flags: <defaults>
</compile_context>

<pallas_src>
import functools

import jax
import jax.numpy as jnp
from jax.experimental import pallas as pl
from jax.experimental.pallas import tpu as pltpu


# ---------------------------------------------------------------------------
# Pallas kernel: batched per-mode packed complex matmul.
#   a_ref: (TM, B, 2*Cin)      = [ar | ai]
#   w_ref: (TM, 2*Cin, 2*Cout) = [[wr, wi], [-wi, wr]]
#   o_ref: (TM, B, 2*Cout)     = [or | oi]
# Contraction is over the packed channel axis only; the leading mode axis is
# the matmul batch dim (one MXU matmul per retained mode).
# ---------------------------------------------------------------------------
def _mode_mix_kernel(a_ref, w_ref, o_ref):
    o_ref[...] = jnp.einsum(
        "mbi,mio->mbo",
        a_ref[...],
        w_ref[...],
        preferred_element_type=jnp.float32,
    ).astype(o_ref.dtype)


def _padded_tile_elems(rows, cols):
    """Elements of a (rows, cols) f32 slab after (8,128) VMEM tiling."""
    return ((rows + 7) // 8 * 8) * ((cols + 127) // 128 * 128)


def _packed_mode_matmul(a_packed, w_packed, *, vmem_block_budget=8 * 1024 * 1024):
    """a_packed: (M, B, 2Cin) f32, w_packed: (M, 2Cin, 2Cout) f32 -> (M, B, 2Cout) f32."""
    M, B, K = a_packed.shape
    N = w_packed.shape[-1]

    # Per-mode resident bytes, accounting for (8,128) layout padding of the
    # trailing two dims, times 2 for the pipeline's double buffering.
    per_mode_bytes = 4 * (
        _padded_tile_elems(B, K) + _padded_tile_elems(K, N) + _padded_tile_elems(B, N)
    )
    tm = max(1, min(M, vmem_block_budget // (2 * per_mode_bytes)))
    grid_m = pl.cdiv(M, tm)

    # Pad the mode axis so every block is fully in bounds (pad rows are
    # discarded afterwards).  These slabs are tiny, so the pad is free.
    m_pad = grid_m * tm - M
    if m_pad:
        a_packed = jnp.pad(a_packed, ((0, m_pad), (0, 0), (0, 0)))
        w_packed = jnp.pad(w_packed, ((0, m_pad), (0, 0), (0, 0)))

    out = pl.pallas_call(
        _mode_mix_kernel,
        out_shape=jax.ShapeDtypeStruct((grid_m * tm, B, N), jnp.float32),
        grid=(grid_m,),
        in_specs=[
            pl.BlockSpec((tm, B, K), lambda m: (m, 0, 0)),
            pl.BlockSpec((tm, K, N), lambda m: (m, 0, 0)),
        ],
        out_specs=pl.BlockSpec((tm, B, N), lambda m: (m, 0, 0)),
        compiler_params=pltpu.CompilerParams(dimension_semantics=("parallel",)),
    )(a_packed, w_packed)

    return out[:M] if m_pad else out


# ---------------------------------------------------------------------------
# SpectralConv2d forward: rfftn (JAX) -> Pallas packed mode mixing -> irfftn.
# ---------------------------------------------------------------------------
def spectral_conv2d(x, weights1, weights2, modes1, modes2, size=None):
    """x: (B, Cin, H, W) f32; weights*: (Cin, Cout, m1, m2) complex64."""
    if size is None:
        size = x.shape[-1]
    B, Cin = x.shape[0], x.shape[1]
    Cout = weights1.shape[1]
    m1, m2 = modes1, modes2
    # Keeps the two out_ft write regions from overlapping (PyTorch would
    # silently let the second write win).
    assert 2 * m1 <= size, "modes1 too large for the requested output size"

    x_ft = jnp.fft.rfftn(x, axes=(2, 3), norm="ortho")          # (B, Cin, H, W//2+1)

    # --- gather the retained modes of both slabs: (2*m1*m2, B, Cin) complex --
    a_low = x_ft[:, :, :m1, :m2]
    a_high = x_ft[:, :, -m1:, :m2]
    a = jnp.stack([a_low, a_high], axis=0)                      # (2, B, Cin, m1, m2)
    a = jnp.transpose(a, (0, 3, 4, 1, 2)).reshape(2 * m1 * m2, B, Cin)
    a_packed = jnp.concatenate(
        [jnp.real(a), jnp.imag(a)], axis=-1).astype(jnp.float32)    # (M, B, 2Cin)

    # --- pack weights once: W = [[wr, wi], [-wi, wr]]  -> (M, 2Cin, 2Cout) ---
    w = jnp.stack([weights1, weights2], axis=0)                  # (2, Cin, Cout, m1, m2)
    w = jnp.transpose(w, (0, 3, 4, 1, 2)).reshape(2 * m1 * m2, Cin, Cout)
    wr, wi = jnp.real(w), jnp.imag(w)
    w_packed = jnp.concatenate(
        [jnp.concatenate([wr, wi], axis=-1),
         jnp.concatenate([-wi, wr], axis=-1)], axis=-2).astype(jnp.float32)

    # --- Pallas kernel: one call for all modes of both slabs ----------------
    o_packed = _packed_mode_matmul(a_packed, w_packed)           # (M, B, 2Cout)

    o_c = (o_packed[..., :Cout] + 1j * o_packed[..., Cout:]).astype(jnp.complex64)
    o_c = o_c.reshape(2, m1, m2, B, Cout).transpose(0, 3, 4, 1, 2)   # (2, B, Cout, m1, m2)

    out_ft = jnp.zeros((B, Cout, size, size // 2 + 1), dtype=jnp.complex64)
    out_ft = out_ft.at[:, :, :m1, :m2].set(o_c[0])
    out_ft = out_ft.at[:, :, size - m1:, :m2].set(o_c[1])
    return jnp.fft.irfftn(out_ft, s=(size, size), axes=(2, 3), norm="ortho")


# ---------------------------------------------------------------------------
# Pure-JAX reference (mirrors the PyTorch module) for correctness checking.
# ---------------------------------------------------------------------------
def _compl_mul2d_ref(a, b):
    return jnp.einsum("bixy,ioxy->boxy", a, b,
                      precision=jax.lax.Precision.HIGHEST)


def _spectral_conv2d_ref(x, weights1, weights2, modes1, modes2, size=None):
    if size is None:
        size = x.shape[-1]
    B = x.shape[0]
    Cout = weights1.shape[1]
    x_ft = jnp.fft.rfftn(x, axes=(2, 3), norm="ortho")
    out_ft = jnp.zeros((B, Cout, size, size // 2 + 1), dtype=jnp.complex64)
    out_ft = out_ft.at[:, :, :modes1, :modes2].set(
        _compl_mul2d_ref(x_ft[:, :, :modes1, :modes2], weights1))
    out_ft = out_ft.at[:, :, size - modes1:, :modes2].set(
        _compl_mul2d_ref(x_ft[:, :, -modes1:, :modes2], weights2))
    return jnp.fft.irfftn(out_ft, s=(size, size), axes=(2, 3), norm="ortho")


if __name__ == "__main__":
    B, Cin, Cout, S, modes = 2, 8, 16, 16, 4

    key = jax.random.PRNGKey(0)
    kx, k1r, k1i, k2r, k2i = jax.random.split(key, 5)
    scale = 1.0 / (Cin * Cout)
    w1 = (scale * (jax.random.uniform(k1r, (Cin, Cout, modes, modes), jnp.float32)
                   + 1j * jax.random.uniform(k1i, (Cin, Cout, modes, modes), jnp.float32))
          ).astype(jnp.complex64)
    w2 = (scale * (jax.random.uniform(k2r, (Cin, Cout, modes, modes), jnp.float32)
                   + 1j * jax.random.uniform(k2i, (Cin, Cout, modes, modes), jnp.float32))
          ).astype(jnp.complex64)
    x = jax.random.normal(kx, (B, Cin, S, S), jnp.float32)

    fwd = jax.jit(functools.partial(spectral_conv2d, modes1=modes, modes2=modes))
    y = fwd(x, w1, w2)
    jax.block_until_ready(y)

    y_ref = _spectral_conv2d_ref(x, w1, w2, modes, modes)
    assert y.shape == (B, Cout, S, S)
    assert bool(jnp.all(jnp.isfinite(y)))
    assert bool(jnp.allclose(y, y_ref, atol=1e-3, rtol=1e-2))
    print("KERNEL_OK")
</pallas_src>

<mosaic_0001>
module attributes {stable_mosaic.version = 11 : i64} {
  func.func @_mode_mix_kernel(%arg0: i32, %arg1: memref<32x2x16xf32, #tpu.memory_space<vmem>>, %arg2: memref<32x16x32xf32, #tpu.memory_space<vmem>>, %arg3: memref<32x2x32xf32, #tpu.memory_space<vmem>>) attributes {dimension_semantics = [#tpu.dimension_semantics<parallel>], iteration_bounds = array<i64: 1>, scalar_prefetch = 0 : i64, scratch_operands = 0 : i64, tpu.core_type = #tpu.core_type<tc>, window_params = [{transform_indices = @transform_0, window_bounds = array<i64: 32, 2, 16>}, {transform_indices = @transform_1, window_bounds = array<i64: 32, 16, 32>}, {transform_indices = @transform_2, window_bounds = array<i64: 32, 2, 32>}]} {
    %c0 = arith.constant 0 : index
    %c0_0 = arith.constant 0 : index
    %c0_1 = arith.constant 0 : index
    %0 = vector.load %arg1[%c0, %c0_0, %c0_1] : memref<32x2x16xf32, #tpu.memory_space<vmem>>, vector<32x2x16xf32>
    %c0_2 = arith.constant 0 : index
    %c0_3 = arith.constant 0 : index
    %c0_4 = arith.constant 0 : index
    %1 = vector.load %arg2[%c0_2, %c0_3, %c0_4] : memref<32x16x32xf32, #tpu.memory_space<vmem>>, vector<32x16x32xf32>
    "tpu.trace_start"() <{level = 10 : i32, message = "mbi,mio->mbo"}> : () -> ()
    %cst = arith.constant dense<0.000000e+00> : vector<32x2x32xf32>
    %2 = tpu.matmul %0, %1, %cst {dimension_numbers = #tpu.dot_dimension_numbers<[2], [1], [1], [2], [0, 0, 0, 1, 1, 2], [0], [0]>} : vector<32x2x16xf32>, vector<32x16x32xf32>, vector<32x2x32xf32> -> vector<32x2x32xf32>
    "tpu.trace_stop"() : () -> ()
    %c0_5 = arith.constant 0 : index
    %c0_6 = arith.constant 0 : index
    %c0_7 = arith.constant 0 : index
    %3 = vector.load %arg3[%c0_5, %c0_6, %c0_7] : memref<32x2x32xf32, #tpu.memory_space<vmem>>, vector<32x2x32xf32>
    tpu.vector_store %arg3[%c0_5, %c0_6, %c0_7], %2 {strides = array<i32>} : memref<32x2x32xf32, #tpu.memory_space<vmem>>, vector<32x2x32xf32>,
    return
  }
  func.func @transform_0(%arg0: i32) -> (i32, i32, i32) {
    %c0_i32 = arith.constant 0 : i32
    %c0_i32_0 = arith.constant 0 : i32
    %c0_i32_1 = arith.constant 0 : i32
    return %arg0, %c0_i32, %c0_i32_0 : i32, i32, i32
  }
  func.func @transform_1(%arg0: i32) -> (i32, i32, i32) {
    %c0_i32 = arith.constant 0 : i32
    %c0_i32_0 = arith.constant 0 : i32
    %c0_i32_1 = arith.constant 0 : i32
    return %arg0, %c0_i32, %c0_i32_0 : i32, i32, i32
  }
  func.func @transform_2(%arg0: i32) -> (i32, i32, i32) {
    %c0_i32 = arith.constant 0 : i32
    %c0_i32_0 = arith.constant 0 : i32
    %c0_i32_1 = arith.constant 0 : i32
    return %arg0, %c0_i32, %c0_i32_0 : i32, i32, i32
  }
}

</mosaic_0001>

<llo_original>
// kernel: custom-call.1
$region0: #{custom-call.1}
  %s0 = inlined_call_operand.hbm [shape: c64[8,16,4,4], index: 0, kind: input, shape index: {}]
  %s1 = inlined_call_operand.vmem [shape: f32[8,16,4,4], index: 1, kind: output, shape index: {}]
  %s2 = scalar_lea.hbm %s0, 128
  $region1: #{custom-call.1} parent=0
    #allocation0 [shape = 's32[1]{0}', space=sflag, size = 0x4, scoped, tag = 'scoped memory for custom-call.1']
    %3 = vsyncpa [#allocation0], 0
    %s5 = sshll.u32 %s2, 4
    %s6 = int_to_ptr.hbm [resolvable:$true] %s5
    %s7 = sshll.u32 %s1, 4
    %s8 = int_to_ptr.vmem [resolvable:$true] %s7
    %10 = dma.hbm_to_vmem [thread:$0]  %s6, 2048, %s8, [#allocation0]
    %12 = dma.done [#allocation0], 2048
    %13 = vsyncpa [#allocation0], 1

// kernel: custom-call
$region0: #{custom-call}
  %s0 = inlined_call_operand.hbm [shape: c64[8,16,4,4], index: 0, kind: input, shape index: {}]
  %s1 = inlined_call_operand.vmem [shape: f32[8,16,4,4], index: 1, kind: output, shape index: {}]
  $region1: #{custom-call} parent=0
    #allocation0 [shape = 's32[1]{0}', space=sflag, size = 0x4, scoped, tag = 'scoped memory for custom-call']
    %2 = vsyncpa [#allocation0], 0
    %s4 = sshll.u32 %s0, 4
    %s5 = int_to_ptr.hbm [resolvable:$true] %s4
    %s6 = sshll.u32 %s1, 4
    %s7 = int_to_ptr.vmem [resolvable:$true] %s6
    %9 = dma.hbm_to_vmem [thread:$0]  %s5, 2048, %s7, [#allocation0]
    %11 = dma.done [#allocation0], 2048
    %12 = vsyncpa [#allocation0], 1

// kernel: neg.1
$region0: #{neg.1}
  #allocation0 [shape = 's32[1]{0}', space=sflag, size = 0x4, scoped, tag = 'scoped memory for neg.1']
  %s0 = inlined_call_operand.vmem [shape: f32[32,8,16], index: 0, kind: input, shape index: {}]
  %s1 = inlined_call_operand.vmem [shape: f32[32,8,16], index: 1, kind: output, shape index: {}]
  %v2 = vld [vmem:[%s0] sm:$0xff]
  %3 = xla_tuple %v2
  %4 = xla_tuple %3
  %v5 = vxor.u32 %v2, 2147483648
  %6 = xla_tuple %v5
  %7 = vst [vmem:[%s1] sm:$0xff] %v5
  %s8 = scalar_lea.vmem %s0, 8
  %v9 = vld [vmem:[%s8] sm:$0xff]
  %10 = xla_tuple %v9
  %11 = xla_tuple %10
  %v12 = vxor.u32 %v9, 2147483648
  %13 = xla_tuple %v12
  %s14 = scalar_lea.vmem %s1, 8
  %15 = vst [vmem:[%s14] sm:$0xff] %v12
  %s16 = scalar_lea.vmem %s0, 16
  %v17 = vld [vmem:[%s16] sm:$0xff]
  %18 = xla_tuple %v17
  %19 = xla_tuple %18
  %v20 = vxor.u32 %v17, 2147483648
  %21 = xla_tuple %v20
  %s22 = scalar_lea.vmem %s1, 16
  %23 = vst [vmem:[%s22] sm:$0xff] %v20
  %s24 = scalar_lea.vmem %s0, 24
  %v25 = vld [vmem:[%s24] sm:$0xff]
  %26 = xla_tuple %v25
  %27 = xla_tuple %26
  %v28 = vxor.u32 %v25, 2147483648
  %29 = xla_tuple %v28
  %s30 = scalar_lea.vmem %s1, 24
  %31 = vst [vmem:[%s30] sm:$0xff] %v28
  %s32 = scalar_lea.vmem %s0, 32
  %v33 = vld [vmem:[%s32] sm:$0xff]
  %34 = xla_tuple %v33
  %35 = xla_tuple %34
  %v36 = vxor.u32 %v33, 2147483648
  %37 = xla_tuple %v36
  %s38 = scalar_lea.vmem %s1, 32
  %39 = vst [vmem:[%s38] sm:$0xff] %v36
  %s40 = scalar_lea.vmem %s0, 40
  %v41 = vld [vmem:[%s40] sm:$0xff]
  %42 = xla_tuple %v41
  %43 = xla_tuple %42
  %v44 = vxor.u32 %v41, 2147483648
  %45 = xla_tuple %v44
  %s46 = scalar_lea.vmem %s1, 40
  %47 = vst [vmem:[%s46] sm:$0xff] %v44
  %s48 = scalar_lea.vmem %s0, 48
  %v49 = vld [vmem:[%s48] sm:$0xff]
  %50 = xla_tuple %v49
  %51 = xla_tuple %50
  %v52 = vxor.u32 %v49, 2147483648
  %53 = xla_tuple %v52
  %s54 = scalar_lea.vmem %s1, 48
  %55 = vst [vmem:[%s54] sm:$0xff] %v52
  %s56 = scalar_lea.vmem %s0, 56
  %v57 = vld [vmem:[%s56] sm:$0xff]
  %58 = xla_tuple %v57
  %59 = xla_tuple %58
  %v60 = vxor.u32 %v57, 2147483648
  %61 = xla_tuple %v60
  %s62 = scalar_lea.vmem %s1, 56
  %63 = vst [vmem:[%s62] sm:$0xff] %v60
  %s64 = scalar_lea.vmem %s0, 64
  %v65 = vld [vmem:[%s64] sm:$0xff]
  %66 = xla_tuple %v65
  %67 = xla_tuple %66
  %v68 = vxor.u32 %v65, 2147483648
  %69 = xla_tuple %v68
  %s70 = scalar_lea.vmem %s1, 64
  %71 = vst [vmem:[%s70] sm:$0xff] %v68
  %s72 = scalar_lea.vmem %s0, 72
  %v73 = vld [vmem:[%s72] sm:$0xff]
  %74 = xla_tuple %v73
  %75 = xla_tuple %74
  %v76 = vxor.u32 %v73, 2147483648
  %77 = xla_tuple %v76
  %s78 = scalar_lea.vmem %s1, 72
  %79 = vst [vmem:[%s78] sm:$0xff] %v76
  %s80 = scalar_lea.vmem %s0, 80
  %v81 = vld [vmem:[%s80] sm:$0xff]
  %82 = xla_tuple %v81
  %83 = xla_tuple %82
  %v84 = vxor.u32 %v81, 2147483648
  %85 = xla_tuple %v84
  %s86 = scalar_lea.vmem %s1, 80
  %87 = vst [vmem:[%s86] sm:$0xff] %v84
  %s88 = scalar_lea.vmem %s0, 88
  %v89 = vld [vmem:[%s88] sm:$0xff]
  %90 = xla_tuple %v89
  %91 = xla_tuple %90
  %v92 = vxor.u32 %v89, 2147483648
  %93 = xla_tuple %v92
  %s94 = scalar_lea.vmem %s1, 88
  %95 = vst [vmem:[%s94] sm:$0xff] %v92
  %s96 = scalar_lea.vmem %s0, 96
  %v97 = vld [vmem:[%s96] sm:$0xff]
  %98 = xla_tuple %v97
  %99 = xla_tuple %98
  %v100 = vxor.u32 %v97, 2147483648
  %101 = xla_tuple %v100
  %s102 = scalar_lea.vmem %s1, 96
  %103 = vst [vmem:[%s102] sm:$0xff] %v100
  %s104 = scalar_lea.vmem %s0, 104
  %v105 = vld [vmem:[%s104] sm:$0xff]
  %106 = xla_tuple %v105
  %107 = xla_tuple %106
  %v108 = vxor.u32 %v105, 2147483648
  %109 = xla_tuple %v108
  %s110 = scalar_lea.vmem %s1, 104
  %111 = vst [vmem:[%s110] sm:$0xff] %v108
  %s112 = scalar_lea.vmem %s0, 112
  %v113 = vld [vmem:[%s112] sm:$0xff]
  %114 = xla_tuple %v113
  %115 = xla_tuple %114
  %v116 = vxor.u32 %v113, 2147483648
  %117 = xla_tuple %v116
  %s118 = scalar_lea.vmem %s1, 112
  %119 = vst [vmem:[%s118] sm:$0xff] %v116
  %s120 = scalar_lea.vmem %s0, 120
  %v121 = vld [vmem:[%s120] sm:$0xff]
  %122 = xla_tuple %v121
  %123 = xla_tuple %122
  %v124 = vxor.u32 %v121, 2147483648
  %125 = xla_tuple %v124
  %s126 = scalar_lea.vmem %s1, 120
  %127 = vst [vmem:[%s126] sm:$0xff] %v124
  %s128 = scalar_lea.vmem %s0, 128
  %v129 = vld [vmem:[%s128] sm:$0xff]
  %130 = xla_tuple %v129
  %131 = xla_tuple %130
  %v132 = vxor.u32 %v129, 2147483648
  %133 = xla_tuple %v132
  %s134 = scalar_lea.vmem %s1, 128
  %135 = vst [vmem:[%s134] sm:$0xff] %v132
  %s136 = scalar_lea.vmem %s0, 136
  %v137 = vld [vmem:[%s136] sm:$0xff]
  %138 = xla_tuple %v137
  %139 = xla_tuple %138
  %v140 = vxor.u32 %v137, 2147483648
  %141 = xla_tuple %v140
  %s142 = scalar_lea.vmem %s1, 136
  %143 = vst [vmem:[%s142] sm:$0xff] %v140
  %s144 = scalar_lea.vmem %s0, 144
  %v145 = vld [vmem:[%s144] sm:$0xff]
  %146 = xla_tuple %v145
  %147 = xla_tuple %146
  %v148 = vxor.u32 %v145, 2147483648
  %149 = xla_tuple %v148
  %s150 = scalar_lea.vmem %s1, 144
  %151 = vst [vmem:[%s150] sm:$0xff] %v148
  %s152 = scalar_lea.vmem %s0, 152
  %v153 = vld [vmem:[%s152] sm:$0xff]
  %154 = xla_tuple %v153
  %155 = xla_tuple %154
  %v156 = vxor.u32 %v153, 2147483648
  %157 = xla_tuple %v156
  %s158 = scalar_lea.vmem %s1, 152
  %159 = vst [vmem:[%s158] sm:$0xff] %v156
  %s160 = scalar_lea.vmem %s0, 160
  %v161 = vld [vmem:[%s160] sm:$0xff]
  %162 = xla_tuple %v161
  %163 = xla_tuple %162
  %v164 = vxor.u32 %v161, 2147483648
  %165 = xla_tuple %v164
  %s166 = scalar_lea.vmem %s1, 160
  %167 = vst [vmem:[%s166] sm:$0xff] %v164
  %s168 = scalar_lea.vmem %s0, 168
  %v169 = vld [vmem:[%s168] sm:$0xff]
  %170 = xla_tuple %v169
  %171 = xla_tuple %170
  %v172 = vxor.u32 %v169, 2147483648
  %173 = xla_tuple %v172
  %s174 = scalar_lea.vmem %s1, 168
  %175 = vst [vmem:[%s174] sm:$0xff] %v172
  %s176 = scalar_lea.vmem %s0, 176
  %v177 = vld [vmem:[%s176] sm:$0xff]
  %178 = xla_tuple %v177
  %179 = xla_tuple %178
  %v180 = vxor.u32 %v177, 2147483648
  %181 = xla_tuple %v180
  %s182 = scalar_lea.vmem %s1, 176
  %183 = vst [vmem:[%s182] sm:$0xff] %v180
  %s184 = scalar_lea.vmem %s0, 184
  %v185 = vld [vmem:[%s184] sm:$0xff]
  %186 = xla_tuple %v185
  %187 = xla_tuple %186
  %v188 = vxor.u32 %v185, 2147483648
  %189 = xla_tuple %v188
  %s190 = scalar_lea.vmem %s1, 184
  %191 = vst [vmem:[%s190] sm:$0xff] %v188
  %s192 = scalar_lea.vmem %s0, 192
  %v193 = vld [vmem:[%s192] sm:$0xff]
  %194 = xla_tuple %v193
  %195 = xla_tuple %194
  %v196 = vxor.u32 %v193, 2147483648
  %197 = xla_tuple %v196
  %s198 = scalar_lea.vmem %s1, 192
  %199 = vst [vmem:[%s198] sm:$0xff] %v196
  %s200 = scalar_lea.vmem %s0, 200
  %v201 = vld [vmem:[%s200] sm:$0xff]
  %202 = xla_tuple %v201
  %203 = xla_tuple %202
  %v204 = vxor.u32 %v201, 2147483648
  %205 = xla_tuple %v204
  %s206 = scalar_lea.vmem %s1, 200
  %207 = vst [vmem:[%s206] sm:$0xff] %v204
  %s208 = scalar_lea.vmem %s0, 208
  %v209 = vld [vmem:[%s208] sm:$0xff]
  %210 = xla_tuple %v209
  %211 = xla_tuple %210
  %v212 = vxor.u32 %v209, 2147483648
  %213 = xla_tuple %v212
  %s214 = scalar_lea.vmem %s1, 208
  %215 = vst [vmem:[%s214] sm:$0xff] %v212
  %s216 = scalar_lea.vmem %s0, 216
  %v217 = vld [vmem:[%s216] sm:$0xff]
  %218 = xla_tuple %v217
  %219 = xla_tuple %218
  %v220 = vxor.u32 %v217, 2147483648
  %221 = xla_tuple %v220
  %s222 = scalar_lea.vmem %s1, 216
  %223 = vst [vmem:[%s222] sm:$0xff] %v220
  %s224 = scalar_lea.vmem %s0, 224
  %v225 = vld [vmem:[%s224] sm:$0xff]
  %226 = xla_tuple %v225
  %227 = xla_tuple %226
  %v228 = vxor.u32 %v225, 2147483648
  %229 = xla_tuple %v228
  %s230 = scalar_lea.vmem %s1, 224
  %231 = vst [vmem:[%s230] sm:$0xff] %v228
  %s232 = scalar_lea.vmem %s0, 232
  %v233 = vld [vmem:[%s232] sm:$0xff]
  %234 = xla_tuple %v233
  %235 = xla_tuple %234
  %v236 = vxor.u32 %v233, 2147483648
  %237 = xla_tuple %v236
  %s238 = scalar_lea.vmem %s1, 232
  %239 = vst [vmem:[%s238] sm:$0xff] %v236
  %s240 = scalar_lea.vmem %s0, 240
  %v241 = vld [vmem:[%s240] sm:$0xff]
  %242 = xla_tuple %v241
  %243 = xla_tuple %242
  %v244 = vxor.u32 %v241, 2147483648
  %245 = xla_tuple %v244
  %s246 = scalar_lea.vmem %s1, 240
  %247 = vst [vmem:[%s246] sm:$0xff] %v244
  %s248 = scalar_lea.vmem %s0, 248
  %v249 = vld [vmem:[%s248] sm:$0xff]
  %250 = xla_tuple %v249
  %251 = xla_tuple %250
  %v252 = vxor.u32 %v249, 2147483648
  %253 = xla_tuple %v252
  %s254 = scalar_lea.vmem %s1, 248
  %255 = vst [vmem:[%s254] sm:$0xff] %v252

// kernel: spectral_conv2d.1
$region0: #{spectral_conv2d.1}
  #allocation0 [shape = 'u32[]', space=smem, size = 0x4, offset = 0x4, fixed_abs, tag = 'smem constant byte address 0x4 - core index']
  #allocation1 [shape = 'u32[72,128]{1,0:T(1,128)}', space=vmem, size = 0x9000, scoped, tag = 'internal scratch']
  %s0 = inlined_call_operand.vmem [shape: f32[32,2,16], index: 0, kind: input, shape index: {}]
  %s1 = inlined_call_operand.vmem [shape: f32[32,16,32], index: 1, kind: input, shape index: {}]
  %s2 = inlined_call_operand.vmem [shape: f32[32,2,32], index: 2, kind: output, shape index: {}]
  %s3 = sld [smem:[#allocation0]]
  $region18: #{spectral_conv2d.1} parent=0
    _
  %s5 = ssub.s32 1, %s3
  %s6 = scalar_select 0, %s5, %s3
  // Predicated region
  $region2: #{spectral_conv2d.1} parent=0 // pred_check
    _
  $region3: #{spectral_conv2d.1} parent=0 // pred_check_branch
    %8 = sbr.rel (0) target = $region5
  $region4: #{spectral_conv2d.1} parent=0 // pred_region
    _
  $region5: #{spectral_conv2d.1} parent=0 // pred_fallthru
    _
  // Predicated region
  $region6: #{spectral_conv2d.1} parent=0 // pred_check
    _
  $region7: #{spectral_conv2d.1} parent=0 // pred_check_branch
    %10 = sbr.rel (0) target = $region9
  $region8: #{spectral_conv2d.1} parent=0 // pred_region
    _
  $region9: #{spectral_conv2d.1} parent=0 // pred_fallthru
    _
  %v11 = vld [vmem:[%s0] sm:$0x3]
  %v12 = vld [vmem:[%s0 + $0x2] sm:$0x3]
  %v13 = vld [vmem:[%s0 + $0x4] sm:$0x3]
  %v14 = vld [vmem:[%s0 + $0x6] sm:$0x3]
  %v15 = vld [vmem:[%s0 + $0x8] sm:$0x3]
  %v16 = vld [vmem:[%s0 + $0xa] sm:$0x3]
  %v17 = vld [vmem:[%s0 + $0xc] sm:$0x3]
  %v18 = vld [vmem:[%s0 + $0xe] sm:$0x3]
  %v19 = vld [vmem:[%s0 + $0x10] sm:$0x3]
  %v20 = vld [vmem:[%s0 + $0x12] sm:$0x3]
  %v21 = vld [vmem:[%s0 + $0x14] sm:$0x3]
  %v22 = vld [vmem:[%s0 + $0x16] sm:$0x3]
  %v23 = vld [vmem:[%s0 + $0x18] sm:$0x3]
  %v24 = vld [vmem:[%s0 + $0x1a] sm:$0x3]
  %v25 = vld [vmem:[%s0 + $0x1c] sm:$0x3]
  %v26 = vld [vmem:[%s0 + $0x1e] sm:$0x3]
  %v27 = vld [vmem:[%s0 + $0x20] sm:$0x3]
  %v28 = vld [vmem:[%s0 + $0x22] sm:$0x3]
  %v29 = vld [vmem:[%s0 + $0x24] sm:$0x3]
  %v30 = vld [vmem:[%s0 + $0x26] sm:$0x3]
  %v31 = vld [vmem:[%s0 + $0x28] sm:$0x3]
  %v32 = vld [vmem:[%s0 + $0x2a] sm:$0x3]
  %v33 = vld [vmem:[%s0 + $0x2c] sm:$0x3]
  %v34 = vld [vmem:[%s0 + $0x2e] sm:$0x3]
  %v35 = vld [vmem:[%s0 + $0x30] sm:$0x3]
  %v36 = vld [vmem:[%s0 + $0x32] sm:$0x3]
  %v37 = vld [vmem:[%s0 + $0x34] sm:$0x3]
  %v38 = vld [vmem:[%s0 + $0x36] sm:$0x3]
  %v39 = vld [vmem:[%s0 + $0x38] sm:$0x3]
  %v40 = vld [vmem:[%s0 + $0x3a] sm:$0x3]
  %v41 = vld [vmem:[%s0 + $0x3c] sm:$0x3]
  %v42 = vld [vmem:[%s0 + $0x3e] sm:$0x3]
  %v43 = vld [vmem:[%s1] sm:$0xff]
  %v44 = vld [vmem:[%s1 + $0x8] sm:$0xff]
  %v45 = vld [vmem:[%s1 + $0x10] sm:$0xff]
  %v46 = vld [vmem:[%s1 + $0x18] sm:$0xff]
  %v47 = vld [vmem:[%s1 + $0x20] sm:$0xff]
  %v48 = vld [vmem:[%s1 + $0x28] sm:$0xff]
  %v49 = vld [vmem:[%s1 + $0x30] sm:$0xff]
  %v50 = vld [vmem:[%s1 + $0x38] sm:$0xff]
  %v51 = vld [vmem:[%s1 + $0x40] sm:$0xff]
  %v52 = vld [vmem:[%s1 + $0x48] sm:$0xff]
  %v53 = vld [vmem:[%s1 + $0x50] sm:$0xff]
  %v54 = vld [vmem:[%s1 + $0x58] sm:$0xff]
  %v55 = vld [vmem:[%s1 + $0x60] sm:$0xff]
  %v56 = vld [vmem:[%s1 + $0x68] sm:$0xff]
  %v57 = vld [vmem:[%s1 + $0x70] sm:$0xff]
  %v58 = vld [vmem:[%s1 + $0x78] sm:$0xff]
  %v59 = vld [vmem:[%s1 + $0x80] sm:$0xff]
  %v60 = vld [vmem:[%s1 + $0x88] sm:$0xff]
  %v61 = vld [vmem:[%s1 + $0x90] sm:$0xff]
  %v62 = vld [vmem:[%s1 + $0x98] sm:$0xff]
  %v63 = vld [vmem:[%s1 + $0xa0] sm:$0xff]
  %v64 = vld [vmem:[%s1 + $0xa8] sm:$0xff]
  %v65 = vld [vmem:[%s1 + $0xb0] sm:$0xff]
  %v66 = vld [vmem:[%s1 + $0xb8] sm:$0xff]
  %v67 = vld [vmem:[%s1 + $0xc0] sm:$0xff]
  %v68 = vld [vmem:[%s1 + $0xc8] sm:$0xff]
  %v69 = vld [vmem:[%s1 + $0xd0] sm:$0xff]
  %v70 = vld [vmem:[%s1 + $0xd8] sm:$0xff]
  %v71 = vld [vmem:[%s1 + $0xe0] sm:$0xff]
  %v72 = vld [vmem:[%s1 + $0xe8] sm:$0xff]
  %v73 = vld [vmem:[%s1 + $0xf0] sm:$0xff]
  %v74 = vld [vmem:[%s1 + $0xf8] sm:$0xff]
  %v75 = vld [vmem:[%s1 + $0x100] sm:$0xff]
  %v76 = vld [vmem:[%s1 + $0x108] sm:$0xff]
  %v77 = vld [vmem:[%s1 + $0x110] sm:$0xff]
  %v78 = vld [vmem:[%s1 + $0x118] sm:$0xff]
  %v79 = vld [vmem:[%s1 + $0x120] sm:$0xff]
  %v80 = vld [vmem:[%s1 + $0x128] sm:$0xff]
  %v81 = vld [vmem:[%s1 + $0x130] sm:$0xff]
  %v82 = vld [vmem:[%s1 + $0x138] sm:$0xff]
  %v83 = vld [vmem:[%s1 + $0x140] sm:$0xff]
  %v84 = vld [vmem:[%s1 + $0x148] sm:$0xff]
  %v85 = vld [vmem:[%s1 + $0x150] sm:$0xff]
  %v86 = vld [vmem:[%s1 + $0x158] sm:$0xff]
  %v87 = vld [vmem:[%s1 + $0x160] sm:$0xff]
  %v88 = vld [vmem:[%s1 + $0x168] sm:$0xff]
  %v89 = vld [vmem:[%s1 + $0x170] sm:$0xff]
  %v90 = vld [vmem:[%s1 + $0x178] sm:$0xff]
  %v91 = vld [vmem:[%s1 + $0x180] sm:$0xff]
  %v92 = vld [vmem:[%s1 + $0x188] sm:$0xff]
  %v93 = vld [vmem:[%s1 + $0x190] sm:$0xff]
  %v94 = vld [vmem:[%s1 + $0x198] sm:$0xff]
  %v95 = vld [vmem:[%s1 + $0x1a0] sm:$0xff]
  %v96 = vld [vmem:[%s1 + $0x1a8] sm:$0xff]
  %v97 = vld [vmem:[%s1 + $0x1b0] sm:$0xff]
  %v98 = vld [vmem:[%s1 + $0x1b8] sm:$0xff]
  %v99 = vld [vmem:[%s1 + $0x1c0] sm:$0xff]
  %v100 = vld [vmem:[%s1 + $0x1c8] sm:$0xff]
  %v101 = vld [vmem:[%s1 + $0x1d0] sm:$0xff]
  %v102 = vld [vmem:[%s1 + $0x1d8] sm:$0xff]
  %v103 = vld [vmem:[%s1 + $0x1e0] sm:$0xff]
  %v104 = vld [vmem:[%s1 + $0x1e8] sm:$0xff]
  %v105 = vld [vmem:[%s1 + $0x1f0] sm:$0xff]
  %v106 = vld [vmem:[%s1 + $0x1f8] sm:$0xff]
  %vm107 = vcmask 130048
  %v109 = vsel %vm107, %v11, 0
  %111 = vmatpush.msra.mxu0 0.0
  %112 = vmatpush.msra.mxu0 0.0
  %113 = vmatpush.msra.mxu0 0.0
  %114 = vmatpush.msra.mxu0 0.0
  %115 = vmatpush.msra.mxu0 0.0
  %116 = vmatpush.msra.mxu0 0.0
  %117 = vmatpush.msra.mxu0 0.0
  %118 = vmatpush.msra.mxu0 0.0
  %119 = vmatpush.msra.mxu0 0.0
  %120 = vmatpush.msra.mxu0 0.0
  %121 = vmatpush.msra.mxu0 0.0
  %122 = vmatpush.msra.mxu0 0.0
  %123 = vmatpush.msra.mxu0 0.0
  %124 = vmatpush.msra.mxu0 0.0
  %125 = vmatpush.msra.mxu0 %v44
  %126 = vmatpush.msra.mxu0 %v43
  %127 = vmatmul.f32.gmra.mxu0 %v109
  %v128 = vpop.f32.mrf.mxu0
  %v129 = vadd.f32 0.0, %v128
  %130 = vdwg.mxu0
  %v132 = vsel %vm107, %v12, 0
  %134 = vmatpush.msra.mxu0 0.0
  %135 = vmatpush.msra.mxu0 0.0
  %136 = vmatpush.msra.mxu0 0.0
  %137 = vmatpush.msra.mxu0 0.0
  %138 = vmatpush.msra.mxu0 0.0
  %139 = vmatpush.msra.mxu0 0.0
  %140 = vmatpush.msra.mxu0 0.0
  %141 = vmatpush.msra.mxu0 0.0
  %142 = vmatpush.msra.mxu0 0.0
  %143 = vmatpush.msra.mxu0 0.0
  %144 = vmatpush.msra.mxu0 0.0
  %145 = vmatpush.msra.mxu0 0.0
  %146 = vmatpush.msra.mxu0 0.0
  %147 = vmatpush.msra.mxu0 0.0
  %148 = vmatpush.msra.mxu0 %v46
  %149 = vmatpush.msra.mxu0 %v45
  %150 = vmatmul.f32.gmra.mxu0 %v132
  %v151 = vpop.f32.mrf.mxu0
  %v152 = vadd.f32 0.0, %v151
  %153 = vdwg.mxu0
  %v155 = vsel %vm107, %v13, 0
  %157 = vmatpush.msra.mxu0 0.0
  %158 = vmatpush.msra.mxu0 0.0
  %159 = vmatpush.msra.mxu0 0.0
  %160 = vmatpush.msra.mxu0 0.0
  %161 = vmatpush.msra.mxu0 0.0
  %162 = vmatpush.msra.mxu0 0.0
  %163 = vmatpush.msra.mxu0 0.0
  %164 = vmatpush.msra.mxu0 0.0
  %165 = vmatpush.msra.mxu0 0.0
  %166 = vmatpush.msra.mxu0 0.0
  %167 = vmatpush.msra.mxu0 0.0
  %168 = vmatpush.msra.mxu0 0.0
  %169 = vmatpush.msra.mxu0 0.0
  %170 = vmatpush.msra.mxu0 0.0
  %171 = vmatpush.msra.mxu0 %v48
  %172 = vmatpush.msra.mxu0 %v47
  %173 = vmatmul.f32.gmra.mxu0 %v155
  %v174 = vpop.f32.mrf.mxu0
  %v175 = vadd.f32 0.0, %v174
  %176 = vdwg.mxu0
  %v178 = vsel %vm107, %v14, 0
  %180 = vmatpush.msra.mxu0 0.0
  %181 = vmatpush.msra.mxu0 0.0
  %182 = vmatpush.msra.mxu0 0.0
  %183 = vmatpush.msra.mxu0 0.0
  %184 = vmatpush.msra.mxu0 0.0
  %185 = vmatpush.msra.mxu0 0.0
  %186 = vmatpush.msra.mxu0 0.0
  %187 = vmatpush.msra.mxu0 0.0
  %188 = vmatpush.msra.mxu0 0.0
  %189 = vmatpush.msra.mxu0 0.0
  %190 = vmatpush.msra.mxu0 0.0
  %191 = vmatpush.msra.mxu0 0.0
  %192 = vmatpush.msra.mxu0 0.0
  %193 = vmatpush.msra.mxu0 0.0
  %194 = vmatpush.msra.mxu0 %v50
  %195 = vmatpush.msra.mxu0 %v49
  %196 = vmatmul.f32.gmra.mxu0 %v178
  %v197 = vpop.f32.mrf.mxu0
  %v198 = vadd.f32 0.0, %v197
  %199 = vdwg.mxu0
  %v201 = vsel %vm107, %v15, 0
  %203 = vmatpush.msra.mxu0 0.0
  %204 = vmatpush.msra.mxu0 0.0
  %205 = vmatpush.msra.mxu0 0.0
  %206 = vmatpush.msra.mxu0 0.0
  %207 = vmatpush.msra.mxu0 0.0
  %208 = vmatpush.msra.mxu0 0.0
  %209 = vmatpush.msra.mxu0 0.0
  %210 = vmatpush.msra.mxu0 0.0
  %211 = vmatpush.msra.mxu0 0.0
  %212 = vmatpush.msra.mxu0 0.0
  %213 = vmatpush.msra.mxu0 0.0
  %214 = vmatpush.msra.mxu0 0.0
  %215 = vmatpush.msra.mxu0 0.0
  %216 = vmatpush.msra.mxu0 0.0
  %217 = vmatpush.msra.mxu0 %v52
  %218 = vmatpush.msra.mxu0 %v51
  %219 = vmatmul.f32.gmra.mxu0 %v201
  %v220 = vpop.f32.mrf.mxu0
  %v221 = vadd.f32 0.0, %v220
  %222 = vdwg.mxu0
  %v224 = vsel %vm107, %v16, 0
  %226 = vmatpush.msra.mxu0 0.0
  %227 = vmatpush.msra.mxu0 0.0
  %228 = vmatpush.msra.mxu0 0.0
  %229 = vmatpush.msra.mxu0 0.0
  %230 = vmatpush.msra.mxu0 0.0
  %231 = vmatpush.msra.mxu0 0.0
  %232 = vmatpush.msra.mxu0 0.0
  %233 = vmatpush.msra.mxu0 0.0
  %234 = vmatpush.msra.mxu0 0.0
  %235 = vmatpush.msra.mxu0 0.0
  %236 = vmatpush.msra.mxu0 0.0
  %237 = vmatpush.msra.mxu0 0.0
  %238 = vmatpush.msra.mxu0 0.0
  %239 = vmatpush.msra.mxu0 0.0
  %240 = vmatpush.msra.mxu0 %v54
  %241 = vmatpush.msra.mxu0 %v53
  %242 = vmatmul.f32.gmra.mxu0 %v224
  %v243 = vpop.f32.mrf.mxu0
  %v244 = vadd.f32 0.0, %v243
  %245 = vdwg.mxu0
  %v247 = vsel %vm107, %v17, 0
  %249 = vmatpush.msra.mxu0 0.0
  %250 = vmatpush.msra.mxu0 0.0
  %251 = vmatpush.msra.mxu0 0.0
  %252 = vmatpush.msra.mxu0 0.0
  %253 = vmatpush.msra.mxu0 0.0
  %254 = vmatpush.msra.mxu0 0.0
  %255 = vmatpush.msra.mxu0 0.0
  %256 = vmatpush.msra.mxu0 0.0
  %257 = vmatpush.msra.mxu0 0.0
  %258 = vmatpush.msra.mxu0 0.0
  %259 = vmatpush.msra.mxu0 0.0
  %260 = vmatpush.msra.mxu0 0.0
  %261 = vmatpush.msra.mxu0 0.0
  %262 = vmatpush.msra.mxu0 0.0
  %263 = vmatpush.msra.mxu0 %v56
  %264 = vmatpush.msra.mxu0 %v55
  %265 = vmatmul.f32.gmra.mxu0 %v247
  %v266 = vpop.f32.mrf.mxu0
  %v267 = vadd.f32 0.0, %v266
  %268 = vdwg.mxu0
  %v270 = vsel %vm107, %v18, 0
  %272 = vmatpush.msra.mxu0 0.0
  %273 = vmatpush.msra.mxu0 0.0
  %274 = vmatpush.msra.mxu0 0.0
  %275 = vmatpush.msra.mxu0 0.0
  %276 = vmatpush.msra.mxu0 0.0
  %277 = vmatpush.msra.mxu0 0.0
  %278 = vmatpush.msra.mxu0 0.0
  %279 = vmatpush.msra.mxu0 0.0
  %280 = vmatpush.msra.mxu0 0.0
  %281 = vmatpush.msra.mxu0 0.0
  %282 = vmatpush.msra.mxu0 0.0
  %283 = vmatpush.msra.mxu0 0.0
  %284 = vmatpush.msra.mxu0 0.0
  %285 = vmatpush.msra.mxu0 0.0
  %286 = vmatpush.msra.mxu0 %v58
  %287 = vmatpush.msra.mxu0 %v57
  %288 = vmatmul.f32.gmra.mxu0 %v270
  %v289 = vpop.f32.mrf.mxu0
  %v290 = vadd.f32 0.0, %v289
  %291 = vdwg.mxu0
  %v293 = vsel %vm107, %v19, 0
  %295 = vmatpush.msra.mxu0 0.0
  %296 = vmatpush.msra.mxu0 0.0
  %297 = vmatpush.msra.mxu0 0.0
  %298 = vmatpush.msra.mxu0 0.0
  %299 = vmatpush.msra.mxu0 0.0
  %300 = vmatpush.msra.mxu0 0.0
  %301 = vmatpush.msra.mxu0 0.0
  %302 = vmatpush.msra.mxu0 0.0
  %303 = vmatpush.msra.mxu0 0.0
  %304 = vmatpush.msra.mxu0 0.0
  %305 = vmatpush.msra.mxu0 0.0
  %306 = vmatpush.msra.mxu0 0.0
  %307 = vmatpush.msra.mxu0 0.0
  %308 = vmatpush.msra.mxu0 0.0
  %309 = vmatpush.msra.mxu0 %v60
  %310 = vmatpush.msra.mxu0 %v59
  %311 = vmatmul.f32.gmra.mxu0 %v293
  %v312 = vpop.f32.mrf.mxu0
  %v313 = vadd.f32 0.0, %v312
  %314 = vdwg.mxu0
  %v316 = vsel %vm107, %v20, 0
  %318 = vmatpush.msra.mxu0 0.0
  %319 = vmatpush.msra.mxu0 0.0
  %320 = vmatpush.msra.mxu0 0.0
  %321 = vmatpush.msra.mxu0 0.0
  %322 = vmatpush.msra.mxu0 0.0
  %323 = vmatpush.msra.mxu0 0.0
  %324 = vmatpush.msra.mxu0 0.0
  %325 = vmatpush.msra.mxu0 0.0
  %326 = vmatpush.msra.mxu0 0.0
  %327 = vmatpush.msra.mxu0 0.0
  %328 = vmatpush.msra.mxu0 0.0
  %329 = vmatpush.msra.mxu0 0.0
  %330 = vmatpush.msra.mxu0 0.0
  %331 = vmatpush.msra.mxu0 0.0
  %332 = vmatpush.msra.mxu0 %v62
  %333 = vmatpush.msra.mxu0 %v61
  %334 = vmatmul.f32.gmra.mxu0 %v316
  %v335 = vpop.f32.mrf.mxu0
  %v336 = vadd.f32 0.0, %v335
  %337 = vdwg.mxu0
  %v339 = vsel %vm107, %v21, 0
  %341 = vmatpush.msra.mxu0 0.0
  %342 = vmatpush.msra.mxu0 0.0
  %343 = vmatpush.msra.mxu0 0.0
  %344 = vmatpush.msra.mxu0 0.0
  %345 = vmatpush.msra.mxu0 0.0
  %346 = vmatpush.msra.mxu0 0.0
  %347 = vmatpush.msra.mxu0 0.0
  %348 = vmatpush.msra.mxu0 0.0
  %349 = vmatpush.msra.mxu0 0.0
  %350 = vmatpush.msra.mxu0 0.0
  %351 = vmatpush.msra.mxu0 0.0
  %352 = vmatpush.msra.mxu0 0.0
  %353 = vmatpush.msra.mxu0 0.0
  %354 = vmatpush.msra.mxu0 0.0
  %355 = vmatpush.msra.mxu0 %v64
  %356 = vmatpush.msra.mxu0 %v63
  %357 = vmatmul.f32.gmra.mxu0 %v339
  %v358 = vpop.f32.mrf.mxu0
  %v359 = vadd.f32 0.0, %v358
  %360 = vdwg.mxu0
  %v362 = vsel %vm107, %v22, 0
  %364 = vmatpush.msra.mxu0 0.0
  %365 = vmatpush.msra.mxu0 0.0
  %366 = vmatpush.msra.mxu0 0.0
  %367 = vmatpush.msra.mxu0 0.0
  %368 = vmatpush.msra.mxu0 0.0
  %369 = vmatpush.msra.mxu0 0.0
  %370 = vmatpush.msra.mxu0 0.0
  %371 = vmatpush.msra.mxu0 0.0
  %372 = vmatpush.msra.mxu0 0.0
  %373 = vmatpush.msra.mxu0 0.0
  %374 = vmatpush.msra.mxu0 0.0
  %375 = vmatpush.msra.mxu0 0.0
  %376 = vmatpush.msra.mxu0 0.0
  %377 = vmatpush.msra.mxu0 0.0
  %378 = vmatpush.msra.mxu0 %v66
  %379 = vmatpush.msra.mxu0 %v65
  %380 = vmatmul.f32.gmra.mxu0 %v362
  %v381 = vpop.f32.mrf.mxu0
  %v382 = vadd.f32 0.0, %v381
  %383 = vdwg.mxu0
  %v385 = vsel %vm107, %v23, 0
  %387 = vmatpush.msra.mxu0 0.0
  %388 = vmatpush.msra.mxu0 0.0
  %389 = vmatpush.msra.mxu0 0.0
  %390 = vmatpush.msra.mxu0 0.0
  %391 = vmatpush.msra.mxu0 0.0
  %392 = vmatpush.msra.mxu0 0.0
  %393 = vmatpush.msra.mxu0 0.0
  %394 = vmatpush.msra.mxu0 0.0
  %395 = vmatpush.msra.mxu0 0.0
  %396 = vmatpush.msra.mxu0 0.0
  %397 = vmatpush.msra.mxu0 0.0
  %398 = vmatpush.msra.mxu0 0.0
  %399 = vmatpush.msra.mxu0 0.0
  %400 = vmatpush.msra.mxu0 0.0
  %401 = vmatpush.msra.mxu0 %v68
  %402 = vmatpush.msra.mxu0 %v67
  %403 = vmatmul.f32.gmra.mxu0 %v385
  %v404 = vpop.f32.mrf.mxu0
  %v405 = vadd.f32 0.0, %v404
  %406 = vdwg.mxu0
  %v408 = vsel %vm107, %v24, 0
  %410 = vmatpush.msra.mxu0 0.0
  %411 = vmatpush.msra.mxu0 0.0
  %412 = vmatpush.msra.mxu0 0.0
  %413 = vmatpush.msra.mxu0 0.0
  %414 = vmatpush.msra.mxu0 0.0
  %415 = vmatpush.msra.mxu0 0.0
  %416 = vmatpush.msra.mxu0 0.0
  %417 = vmatpush.msra.mxu0 0.0
  %418 = vmatpush.msra.mxu0 0.0
  %419 = vmatpush.msra.mxu0 0.0
  %420 = vmatpush.msra.mxu0 0.0
  %421 = vmatpush.msra.mxu0 0.0
  %422 = vmatpush.msra.mxu0 0.0
  %423 = vmatpush.msra.mxu0 0.0
  %424 = vmatpush.msra.mxu0 %v70
  %425 = vmatpush.msra.mxu0 %v69
  %426 = vmatmul.f32.gmra.mxu0 %v408
  %v427 = vpop.f32.mrf.mxu0
  %v428 = vadd.f32 0.0, %v427
  %429 = vdwg.mxu0
  %v431 = vsel %vm107, %v25, 0
  %433 = vmatpush.msra.mxu0 0.0
  %434 = vmatpush.msra.mxu0 0.0
  %435 = vmatpush.msra.mxu0 0.0
  %436 = vmatpush.msra.mxu0 0.0
  %437 = vmatpush.msra.mxu0 0.0
  %438 = vmatpush.msra.mxu0 0.0
  %439 = vmatpush.msra.mxu0 0.0
  %440 = vmatpush.msra.mxu0 0.0
  %441 = vmatpush.msra.mxu0 0.0
  %442 = vmatpush.msra.mxu0 0.0
  %443 = vmatpush.msra.mxu0 0.0
  %444 = vmatpush.msra.mxu0 0.0
  %445 = vmatpush.msra.mxu0 0.0
  %446 = vmatpush.msra.mxu0 0.0
  %447 = vmatpush.msra.mxu0 %v72
  %448 = vmatpush.msra.mxu0 %v71
  %449 = vmatmul.f32.gmra.mxu0 %v431
  %v450 = vpop.f32.mrf.mxu0
  %v451 = vadd.f32 0.0, %v450
  %452 = vdwg.mxu0
  %v454 = vsel %vm107, %v26, 0
  %456 = vmatpush.msra.mxu0 0.0
  %457 = vmatpush.msra.mxu0 0.0
  %458 = vmatpush.msra.mxu0 0.0
  %459 = vmatpush.msra.mxu0 0.0
  %460 = vmatpush.msra.mxu0 0.0
  %461 = vmatpush.msra.mxu0 0.0
  %462 = vmatpush.msra.mxu0 0.0
  %463 = vmatpush.msra.mxu0 0.0
  %464 = vmatpush.msra.mxu0 0.0
  %465 = vmatpush.msra.mxu0 0.0
  %466 = vmatpush.msra.mxu0 0.0
  %467 = vmatpush.msra.mxu0 0.0
  %468 = vmatpush.msra.mxu0 0.0
  %469 = vmatpush.msra.mxu0 0.0
  %470 = vmatpush.msra.mxu0 %v74
  %471 = vmatpush.msra.mxu0 %v73
  %472 = vmatmul.f32.gmra.mxu0 %v454
  %v473 = vpop.f32.mrf.mxu0
  %v474 = vadd.f32 0.0, %v473
  %475 = vdwg.mxu0
  %v477 = vsel %vm107, %v27, 0
  %479 = vmatpush.msra.mxu0 0.0
  %480 = vmatpush.msra.mxu0 0.0
  %481 = vmatpush.msra.mxu0 0.0
  %482 = vmatpush.msra.mxu0 0.0
  %483 = vmatpush.msra.mxu0 0.0
  %484 = vmatpush.msra.mxu0 0.0
  %485 = vmatpush.msra.mxu0 0.0
  %486 = vmatpush.msra.mxu0 0.0
  %487 = vmatpush.msra.mxu0 0.0
  %488 = vmatpush.msra.mxu0 0.0
  %489 = vmatpush.msra.mxu0 0.0
  %490 = vmatpush.msra.mxu0 0.0
  %491 = vmatpush.msra.mxu0 0.0
  %492 = vmatpush.msra.mxu0 0.0
  %493 = vmatpush.msra.mxu0 %v76
  %494 = vmatpush.msra.mxu0 %v75
  %495 = vmatmul.f32.gmra.mxu0 %v477
  %v496 = vpop.f32.mrf.mxu0
  %v497 = vadd.f32 0.0, %v496
  %498 = vdwg.mxu0
  %v500 = vsel %vm107, %v28, 0
  %502 = vmatpush.msra.mxu0 0.0
  %503 = vmatpush.msra.mxu0 0.0
  %504 = vmatpush.msra.mxu0 0.0
  %505 = vmatpush.msra.mxu0 0.0
  %506 = vmatpush.msra.mxu0 0.0
  %507 = vmatpush.msra.mxu0 0.0
  %508 = vmatpush.msra.mxu0 0.0
  %509 = vmatpush.msra.mxu0 0.0
  %510 = vmatpush.msra.mxu0 0.0
  %511 = vmatpush.msra.mxu0 0.0
  %512 = vmatpush.msra.mxu0 0.0
  %513 = vmatpush.msra.mxu0 0.0
  %514 = vmatpush.msra.mxu0 0.0
  %515 = vmatpush.msra.mxu0 0.0
  %516 = vmatpush.msra.mxu0 %v78
  %517 = vmatpush.msra.mxu0 %v77
  %518 = vmatmul.f32.gmra.mxu0 %v500
  %v519 = vpop.f32.mrf.mxu0
  %v520 = vadd.f32 0.0, %v519
  %521 = vdwg.mxu0
  %v523 = vsel %vm107, %v29, 0
  %525 = vmatpush.msra.mxu0 0.0
  %526 = vmatpush.msra.mxu0 0.0
  %527 = vmatpush.msra.mxu0 0.0
  %528 = vmatpush.msra.mxu0 0.0
  %529 = vmatpush.msra.mxu0 0.0
  %530 = vmatpush.msra.mxu0 0.0
  %531 = vmatpush.msra.mxu0 0.0
  %532 = vmatpush.msra.mxu0 0.0
  %533 = vmatpush.msra.mxu0 0.0
  %534 = vmatpush.msra.mxu0 0.0
  %535 = vmatpush.msra.mxu0 0.0
  %536 = vmatpush.msra.mxu0 0.0
  %537 = vmatpush.msra.mxu0 0.0
  %538 = vmatpush.msra.mxu0 0.0
  %539 = vmatpush.msra.mxu0 %v80
  %540 = vmatpush.msra.mxu0 %v79
  %541 = vmatmul.f32.gmra.mxu0 %v523
  %v542 = vpop.f32.mrf.mxu0
  %v543 = vadd.f32 0.0, %v542
  %544 = vdwg.mxu0
  %v546 = vsel %vm107, %v30, 0
  %548 = vmatpush.msra.mxu0 0.0
  %549 = vmatpush.msra.mxu0 0.0
  %550 = vmatpush.msra.mxu0 0.0
  %551 = vmatpush.msra.mxu0 0.0
  %552 = vmatpush.msra.mxu0 0.0
  %553 = vmatpush.msra.mxu0 0.0
  %554 = vmatpush.msra.mxu0 0.0
  %555 = vmatpush.msra.mxu0 0.0
  %556 = vmatpush.msra.mxu0 0.0
  %557 = vmatpush.msra.mxu0 0.0
  %558 = vmatpush.msra.mxu0 0.0
  %559 = vmatpush.msra.mxu0 0.0
  %560 = vmatpush.msra.mxu0 0.0
  %561 = vmatpush.msra.mxu0 0.0
  %562 = vmatpush.msra.mxu0 %v82
  %563 = vmatpush.msra.mxu0 %v81
  %564 = vmatmul.f32.gmra.mxu0 %v546
  %v565 = vpop.f32.mrf.mxu0
  %v566 = vadd.f32 0.0, %v565
  %567 = vdwg.mxu0
  %v569 = vsel %vm107, %v31, 0
  %571 = vmatpush.msra.mxu0 0.0
  %572 = vmatpush.msra.mxu0 0.0
  %573 = vmatpush.msra.mxu0 0.0
  %574 = vmatpush.msra.mxu0 0.0
  %575 = vmatpush.msra.mxu0 0.0
  %576 = vmatpush.msra.mxu0 0.0
  %577 = vmatpush.msra.mxu0 0.0
  %578 = vmatpush.msra.mxu0 0.0
  %579 = vmatpush.msra.mxu0 0.0
  %580 = vmatpush.msra.mxu0 0.0
  %581 = vmatpush.msra.mxu0 0.0
  %582 = vmatpush.msra.mxu0 0.0
  %583 = vmatpush.msra.mxu0 0.0
  %584 = vmatpush.msra.mxu0 0.0
  %585 = vmatpush.msra.mxu0 %v84
  %586 = vmatpush.msra.mxu0 %v83
  %587 = vmatmul.f32.gmra.mxu0 %v569
  %v588 = vpop.f32.mrf.mxu0
  %v589 = vadd.f32 0.0, %v588
  %590 = vdwg.mxu0
  %v592 = vsel %vm107, %v32, 0
  %594 = vmatpush.msra.mxu0 0.0
  %595 = vmatpush.msra.mxu0 0.0
  %596 = vmatpush.msra.mxu0 0.0
  %597 = vmatpush.msra.mxu0 0.0
  %598 = vmatpush.msra.mxu0 0.0
  %599 = vmatpush.msra.mxu0 0.0
  %600 = vmatpush.msra.mxu0 0.0
  %601 = vmatpush.msra.mxu0 0.0
  %602 = vmatpush.msra.mxu0 0.0
  %603 = vmatpush.msra.mxu0 0.0
  %604 = vmatpush.msra.mxu0 0.0
  %605 = vmatpush.msra.mxu0 0.0
  %606 = vmatpush.msra.mxu0 0.0
  %607 = vmatpush.msra.mxu0 0.0
  %608 = vmatpush.msra.mxu0 %v86
  %609 = vmatpush.msra.mxu0 %v85
  %610 = vmatmul.f32.gmra.mxu0 %v592
  %v611 = vpop.f32.mrf.mxu0
  %v612 = vadd.f32 0.0, %v611
  %613 = vdwg.mxu0
  %v615 = vsel %vm107, %v33, 0
  %617 = vmatpush.msra.mxu0 0.0
  %618 = vmatpush.msra.mxu0 0.0
  %619 = vmatpush.msra.mxu0 0.0
  %620 = vmatpush.msra.mxu0 0.0
  %621 = vmatpush.msra.mxu0 0.0
  %622 = vmatpush.msra.mxu0 0.0
  %623 = vmatpush.msra.mxu0 0.0
  %624 = vmatpush.msra.mxu0 0.0
  %625 = vmatpush.msra.mxu0 0.0
  %626 = vmatpush.msra.mxu0 0.0
  %627 = vmatpush.msra.mxu0 0.0
  %628 = vmatpush.msra.mxu0 0.0
  %629 = vmatpush.msra.mxu0 0.0
  %630 = vmatpush.msra.mxu0 0.0
  %631 = vmatpush.msra.mxu0 %v88
  %632 = vmatpush.msra.mxu0 %v87
  %633 = vmatmul.f32.gmra.mxu0 %v615
  %v634 = vpop.f32.mrf.mxu0
  %v635 = vadd.f32 0.0, %v634
  %636 = vdwg.mxu0
  %v638 = vsel %vm107, %v34, 0
  %640 = vmatpush.msra.mxu0 0.0
  %641 = vmatpush.msra.mxu0 0.0
  %642 = vmatpush.msra.mxu0 0.0
  %643 = vmatpush.msra.mxu0 0.0
  %644 = vmatpush.msra.mxu0 0.0
  %645 = vmatpush.msra.mxu0 0.0
  %646 = vmatpush.msra.mxu0 0.0
  %647 = vmatpush.msra.mxu0 0.0
  %648 = vmatpush.msra.mxu0 0.0
  %649 = vmatpush.msra.mxu0 0.0
  %650 = vmatpush.msra.mxu0 0.0
  %651 = vmatpush.msra.mxu0 0.0
  %652 = vmatpush.msra.mxu0 0.0
  %653 = vmatpush.msra.mxu0 0.0
  %654 = vmatpush.msra.mxu0 %v90
  %655 = vmatpush.msra.mxu0 %v89
  %656 = vmatmul.f32.gmra.mxu0 %v638
  %v657 = vpop.f32.mrf.mxu0
  %v658 = vadd.f32 0.0, %v657
  %659 = vdwg.mxu0
  %v661 = vsel %vm107, %v35, 0
  %663 = vmatpush.msra.mxu0 0.0
  %664 = vmatpush.msra.mxu0 0.0
  %665 = vmatpush.msra.mxu0 0.0
  %666 = vmatpush.msra.mxu0 0.0
  %667 = vmatpush.msra.mxu0 0.0
  %668 = vmatpush.msra.mxu0 0.0
  %669 = vmatpush.msra.mxu0 0.0
  %670 = vmatpush.msra.mxu0 0.0
  %671 = vmatpush.msra.mxu0 0.0
  %672 = vmatpush.msra.mxu0 0.0
  %673 = vmatpush.msra.mxu0 0.0
  %674 = vmatpush.msra.mxu0 0.0
  %675 = vmatpush.msra.mxu0 0.0
  %676 = vmatpush.msra.mxu0 0.0
  %677 = vmatpush.msra.mxu0 %v92
  %678 = vmatpush.msra.mxu0 %v91
  %679 = vmatmul.f32.gmra.mxu0 %v661
  %v680 = vpop.f32.mrf.mxu0
  %v681 = vadd.f32 0.0, %v680
  %682 = vdwg.mxu0
  %v684 = vsel %vm107, %v36, 0
  %686 = vmatpush.msra.mxu0 0.0
  %687 = vmatpush.msra.mxu0 0.0
  %688 = vmatpush.msra.mxu0 0.0
  %689 = vmatpush.msra.mxu0 0.0
  %690 = vmatpush.msra.mxu0 0.0
  %691 = vmatpush.msra.mxu0 0.0
  %692 = vmatpush.msra.mxu0 0.0
  %693 = vmatpush.msra.mxu0 0.0
  %694 = vmatpush.msra.mxu0 0.0
  %695 = vmatpush.msra.mxu0 0.0
  %696 = vmatpush.msra.mxu0 0.0
  %697 = vmatpush.msra.mxu0 0.0
  %698 = vmatpush.msra.mxu0 0.0
  %699 = vmatpush.msra.mxu0 0.0
  %700 = vmatpush.msra.mxu0 %v94
  %701 = vmatpush.msra.mxu0 %v93
  %702 = vmatmul.f32.gmra.mxu0 %v684
  %v703 = vpop.f32.mrf.mxu0
  %v704 = vadd.f32 0.0, %v703
  %705 = vdwg.mxu0
  %v707 = vsel %vm107, %v37, 0
  %709 = vmatpush.msra.mxu0 0.0
  %710 = vmatpush.msra.mxu0 0.0
  %711 = vmatpush.msra.mxu0 0.0
  %712 = vmatpush.msra.mxu0 0.0
  %713 = vmatpush.msra.mxu0 0.0
  %714 = vmatpush.msra.mxu0 0.0
  %715 = vmatpush.msra.mxu0 0.0
  %716 = vmatpush.msra.mxu0 0.0
  %717 = vmatpush.msra.mxu0 0.0
  %718 = vmatpush.msra.mxu0 0.0
  %719 = vmatpush.msra.mxu0 0.0
  %720 = vmatpush.msra.mxu0 0.0
  %721 = vmatpush.msra.mxu0 0.0
  %722 = vmatpush.msra.mxu0 0.0
  %723 = vmatpush.msra.mxu0 %v96
  %724 = vmatpush.msra.mxu0 %v95
  %725 = vmatmul.f32.gmra.mxu0 %v707
  %v726 = vpop.f32.mrf.mxu0
  %v727 = vadd.f32 0.0, %v726
  %728 = vdwg.mxu0
  %v730 = vsel %vm107, %v38, 0
  %732 = vmatpush.msra.mxu0 0.0
  %733 = vmatpush.msra.mxu0 0.0
  %734 = vmatpush.msra.mxu0 0.0
  %735 = vmatpush.msra.mxu0 0.0
  %736 = vmatpush.msra.mxu0 0.0
  %737 = vmatpush.msra.mxu0 0.0
  %738 = vmatpush.msra.mxu0 0.0
  %739 = vmatpush.msra.mxu0 0.0
  %740 = vmatpush.msra.mxu0 0.0
  %741 = vmatpush.msra.mxu0 0.0
  %742 = vmatpush.msra.mxu0 0.0
  %743 = vmatpush.msra.mxu0 0.0
  %744 = vmatpush.msra.mxu0 0.0
  %745 = vmatpush.msra.mxu0 0.0
  %746 = vmatpush.msra.mxu0 %v98
  %747 = vmatpush.msra.mxu0 %v97
  %748 = vmatmul.f32.gmra.mxu0 %v730
  %v749 = vpop.f32.mrf.mxu0
  %v750 = vadd.f32 0.0, %v749
  %751 = vdwg.mxu0
  %v753 = vsel %vm107, %v39, 0
  %755 = vmatpush.msra.mxu0 0.0
  %756 = vmatpush.msra.mxu0 0.0
  %757 = vmatpush.msra.mxu0 0.0
  %758 = vmatpush.msra.mxu0 0.0
  %759 = vmatpush.msra.mxu0 0.0
  %760 = vmatpush.msra.mxu0 0.0
  %761 = vmatpush.msra.mxu0 0.0
  %762 = vmatpush.msra.mxu0 0.0
  %763 = vmatpush.msra.mxu0 0.0
  %764 = vmatpush.msra.mxu0 0.0
  %765 = vmatpush.msra.mxu0 0.0
  %766 = vmatpush.msra.mxu0 0.0
  %767 = vmatpush.msra.mxu0 0.0
  %768 = vmatpush.msra.mxu0 0.0
  %769 = vmatpush.msra.mxu0 %v100
  %770 = vmatpush.msra.mxu0 %v99
  %771 = vmatmul.f32.gmra.mxu0 %v753
  %v772 = vpop.f32.mrf.mxu0
  %v773 = vadd.f32 0.0, %v772
  %774 = vdwg.mxu0
  %v776 = vsel %vm107, %v40, 0
  %778 = vmatpush.msra.mxu0 0.0
  %779 = vmatpush.msra.mxu0 0.0
  %780 = vmatpush.msra.mxu0 0.0
  %781 = vmatpush.msra.mxu0 0.0
  %782 = vmatpush.msra.mxu0 0.0
  %783 = vmatpush.msra.mxu0 0.0
  %784 = vmatpush.msra.mxu0 0.0
  %785 = vmatpush.msra.mxu0 0.0
  %786 = vmatpush.msra.mxu0 0.0
  %787 = vmatpush.msra.mxu0 0.0
  %788 = vmatpush.msra.mxu0 0.0
  %789 = vmatpush.msra.mxu0 0.0
  %790 = vmatpush.msra.mxu0 0.0
  %791 = vmatpush.msra.mxu0 0.0
  %792 = vmatpush.msra.mxu0 %v102
  %793 = vmatpush.msra.mxu0 %v101
  %794 = vmatmul.f32.gmra.mxu0 %v776
  %v795 = vpop.f32.mrf.mxu0
  %v796 = vadd.f32 0.0, %v795
  %797 = vdwg.mxu0
  %v799 = vsel %vm107, %v41, 0
  %801 = vmatpush.msra.mxu0 0.0
  %802 = vmatpush.msra.mxu0 0.0
  %803 = vmatpush.msra.mxu0 0.0
  %804 = vmatpush.msra.mxu0 0.0
  %805 = vmatpush.msra.mxu0 0.0
  %806 = vmatpush.msra.mxu0 0.0
  %807 = vmatpush.msra.mxu0 0.0
  %808 = vmatpush.msra.mxu0 0.0
  %809 = vmatpush.msra.mxu0 0.0
  %810 = vmatpush.msra.mxu0 0.0
  %811 = vmatpush.msra.mxu0 0.0
  %812 = vmatpush.msra.mxu0 0.0
  %813 = vmatpush.msra.mxu0 0.0
  %814 = vmatpush.msra.mxu0 0.0
  %815 = vmatpush.msra.mxu0 %v104
  %816 = vmatpush.msra.mxu0 %v103
  %817 = vmatmul.f32.gmra.mxu0 %v799
  %v818 = vpop.f32.mrf.mxu0
  %v819 = vadd.f32 0.0, %v818
  %820 = vdwg.mxu0
  %v822 = vsel %vm107, %v42, 0
  %824 = vmatpush.msra.mxu0 0.0
  %825 = vmatpush.msra.mxu0 0.0
  %826 = vmatpush.msra.mxu0 0.0
  %827 = vmatpush.msra.mxu0 0.0
  %828 = vmatpush.msra.mxu0 0.0
  %829 = vmatpush.msra.mxu0 0.0
  %830 = vmatpush.msra.mxu0 0.0
  %831 = vmatpush.msra.mxu0 0.0
  %832 = vmatpush.msra.mxu0 0.0
  %833 = vmatpush.msra.mxu0 0.0
  %834 = vmatpush.msra.mxu0 0.0
  %835 = vmatpush.msra.mxu0 0.0
  %836 = vmatpush.msra.mxu0 0.0
  %837 = vmatpush.msra.mxu0 0.0
  %838 = vmatpush.msra.mxu0 %v106
  %839 = vmatpush.msra.mxu0 %v105
  %840 = vmatmul.f32.gmra.mxu0 %v822
  %v841 = vpop.f32.mrf.mxu0
  %v842 = vadd.f32 0.0, %v841
  %843 = vdwg.mxu0
  %vm844 = vcmask 254976
  %845 = vst.msk [vmem:[%s2] sm:$0x3] %vm844, %v129
  %846 = vst.msk [vmem:[%s2 + $0x2] sm:$0x3] %vm844, %v152
  %847 = vst.msk [vmem:[%s2 + $0x4] sm:$0x3] %vm844, %v175
  %848 = vst.msk [vmem:[%s2 + $0x6] sm:$0x3] %vm844, %v198
  %849 = vst.msk [vmem:[%s2 + $0x8] sm:$0x3] %vm844, %v221
  %850 = vst.msk [vmem:[%s2 + $0xa] sm:$0x3] %vm844, %v244
  %851 = vst.msk [vmem:[%s2 + $0xc] sm:$0x3] %vm844, %v267
  %852 = vst.msk [vmem:[%s2 + $0xe] sm:$0x3] %vm844, %v290
  %853 = vst.msk [vmem:[%s2 + $0x10] sm:$0x3] %vm844, %v313
  %854 = vst.msk [vmem:[%s2 + $0x12] sm:$0x3] %vm844, %v336
  %855 = vst.msk [vmem:[%s2 + $0x14] sm:$0x3] %vm844, %v359
  %856 = vst.msk [vmem:[%s2 + $0x16] sm:$0x3] %vm844, %v382
  %857 = vst.msk [vmem:[%s2 + $0x18] sm:$0x3] %vm844, %v405
  %858 = vst.msk [vmem:[%s2 + $0x1a] sm:$0x3] %vm844, %v428
  %859 = vst.msk [vmem:[%s2 + $0x1c] sm:$0x3] %vm844, %v451
  %860 = vst.msk [vmem:[%s2 + $0x1e] sm:$0x3] %vm844, %v474
  %861 = vst.msk [vmem:[%s2 + $0x20] sm:$0x3] %vm844, %v497
  %862 = vst.msk [vmem:[%s2 + $0x22] sm:$0x3] %vm844, %v520
  %863 = vst.msk [vmem:[%s2 + $0x24] sm:$0x3] %vm844, %v543
  %864 = vst.msk [vmem:[%s2 + $0x26] sm:$0x3] %vm844, %v566
  %865 = vst.msk [vmem:[%s2 + $0x28] sm:$0x3] %vm844, %v589
  %866 = vst.msk [vmem:[%s2 + $0x2a] sm:$0x3] %vm844, %v612
  %867 = vst.msk [vmem:[%s2 + $0x2c] sm:$0x3] %vm844, %v635
  %868 = vst.msk [vmem:[%s2 + $0x2e] sm:$0x3] %vm844, %v658
  %869 = vst.msk [vmem:[%s2 + $0x30] sm:$0x3] %vm844, %v681
  %870 = vst.msk [vmem:[%s2 + $0x32] sm:$0x3] %vm844, %v704
  %871 = vst.msk [vmem:[%s2 + $0x34] sm:$0x3] %vm844, %v727
  %872 = vst.msk [vmem:[%s2 + $0x36] sm:$0x3] %vm844, %v750
  %873 = vst.msk [vmem:[%s2 + $0x38] sm:$0x3] %vm844, %v773
  %874 = vst.msk [vmem:[%s2 + $0x3a] sm:$0x3] %vm844, %v796
  %875 = vst.msk [vmem:[%s2 + $0x3c] sm:$0x3] %vm844, %v819
  %876 = vst.msk [vmem:[%s2 + $0x3e] sm:$0x3] %vm844, %v842
  // Predicated region
  $region10: #{spectral_conv2d.1} parent=0 // pred_check
    _
  $region11: #{spectral_conv2d.1} parent=0 // pred_check_branch
    %878 = sbr.rel (0) target = $region13
  $region12: #{spectral_conv2d.1} parent=0 // pred_region
    _
  $region13: #{spectral_conv2d.1} parent=0 // pred_fallthru
    _
  // Predicated region
  $region14: #{spectral_conv2d.1} parent=0 // pred_check
    _
  $region15: #{spectral_conv2d.1} parent=0 // pred_check_branch
    %880 = sbr.rel (0) target = $region17
  $region16: #{spectral_conv2d.1} parent=0 // pred_region
    _
  $region17: #{spectral_conv2d.1} parent=0 // pred_fallthru
    _

// kernel: reverse.1
$region0: #{reverse.1}
  #allocation0 [shape = 's32[1]{0}', space=sflag, size = 0x4, scoped, tag = 'scoped memory for reverse.1']
  %s0 = inlined_call_operand.vmem [shape: f32[2,16,16,7], index: 0, kind: input, shape index: {}]
  %s1 = inlined_call_operand.vmem [shape: f32[2,16,16,7], index: 1, kind: output, shape index: {}]
  %s2 = scalar_lea.vmem %s0, 96
  %v3 = vld [vmem:[%s2] sm:$0xff]
  %4 = vst [vmem:[%s1] sm:$0xff] %v3
  %s5 = scalar_lea.vmem %s0, 208
  %v6 = vld [vmem:[%s5] sm:$0xff]
  %s7 = scalar_lea.vmem %s1, 112
  %8 = vst [vmem:[%s7] sm:$0xff] %v6
  %s9 = scalar_lea.vmem %s0, 80
  %v10 = vld [vmem:[%s9] sm:$0xff]
  %s11 = scalar_lea.vmem %s1, 16
  %12 = vst [vmem:[%s11] sm:$0xff] %v10
  %s13 = scalar_lea.vmem %s0, 192
  %v14 = vld [vmem:[%s13] sm:$0xff]
  %s15 = scalar_lea.vmem %s1, 128
  %16 = vst [vmem:[%s15] sm:$0xff] %v14
  %s17 = scalar_lea.vmem %s0, 64
  %v18 = vld [vmem:[%s17] sm:$0xff]
  %s19 = scalar_lea.vmem %s1, 32
  %20 = vst [vmem:[%s19] sm:$0xff] %v18
  %s21 = scalar_lea.vmem %s0, 176
  %v22 = vld [vmem:[%s21] sm:$0xff]
  %s23 = scalar_lea.vmem %s1, 144
  %24 = vst [vmem:[%s23] sm:$0xff] %v22
  %s25 = scalar_lea.vmem %s0, 48
  %v26 = vld [vmem:[%s25] sm:$0xff]
  %s27 = scalar_lea.vmem %s1, 48
  %28 = vst [vmem:[%s27] sm:$0xff] %v26
  %s29 = scalar_lea.vmem %s0, 160
  %v30 = vld [vmem:[%s29] sm:$0xff]
  %s31 = scalar_lea.vmem %s1, 160
  %32 = vst [vmem:[%s31] sm:$0xff] %v30
  %s33 = scalar_lea.vmem %s0, 32
  %v34 = vld [vmem:[%s33] sm:$0xff]
  %s35 = scalar_lea.vmem %s1, 64
  %36 = vst [vmem:[%s35] sm:$0xff] %v34
  %s37 = scalar_lea.vmem %s0, 144
  %v38 = vld [vmem:[%s37] sm:$0xff]
  %s39 = scalar_lea.vmem %s1, 176
  %40 = vst [vmem:[%s39] sm:$0xff] %v38
  %s41 = scalar_lea.vmem %s0, 16
  %v42 = vld [vmem:[%s41] sm:$0xff]
  %s43 = scalar_lea.vmem %s1, 80
  %44 = vst [vmem:[%s43] sm:$0xff] %v42
  %s45 = scalar_lea.vmem %s0, 128
  %v46 = vld [vmem:[%s45] sm:$0xff]
  %s47 = scalar_lea.vmem %s1, 192
  %48 = vst [vmem:[%s47] sm:$0xff] %v46
  %v49 = vld [vmem:[%s0] sm:$0xff]
  %s50 = scalar_lea.vmem %s1, 96
  %51 = vst [vmem:[%s50] sm:$0xff] %v49
  %s52 = scalar_lea.vmem %s0, 112
  %v53 = vld [vmem:[%s52] sm:$0xff]
  %s54 = scalar_lea.vmem %s1, 208
  %55 = vst [vmem:[%s54] sm:$0xff] %v53
  %s56 = scalar_lea.vmem %s0, 104
  %v57 = vld [vmem:[%s56] sm:$0xff]
  %s58 = scalar_lea.vmem %s1, 8
  %59 = vst [vmem:[%s58] sm:$0xff] %v57
  %s60 = scalar_lea.vmem %s0, 216
  %v61 = vld [vmem:[%s60] sm:$0xff]
  %s62 = scalar_lea.vmem %s1, 120
  %63 = vst [vmem:[%s62] sm:$0xff] %v61
  %s64 = scalar_lea.vmem %s0, 88
  %v65 = vld [vmem:[%s64] sm:$0xff]
  %s66 = scalar_lea.vmem %s1, 24
  %67 = vst [vmem:[%s66] sm:$0xff] %v65
  %s68 = scalar_lea.vmem %s0, 200
  %v69 = vld [vmem:[%s68] sm:$0xff]
  %s70 = scalar_lea.vmem %s1, 136
  %71 = vst [vmem:[%s70] sm:$0xff] %v69
  %s72 = scalar_lea.vmem %s0, 72
  %v73 = vld [vmem:[%s72] sm:$0xff]
  %s74 = scalar_lea.vmem %s1, 40
  %75 = vst [vmem:[%s74] sm:$0xff] %v73
  %s76 = scalar_lea.vmem %s0, 184
  %v77 = vld [vmem:[%s76] sm:$0xff]
  %s78 = scalar_lea.vmem %s1, 152
  %79 = vst [vmem:[%s78] sm:$0xff] %v77
  %s80 = scalar_lea.vmem %s0, 56
  %v81 = vld [vmem:[%s80] sm:$0xff]
  %s82 = scalar_lea.vmem %s1, 56
  %83 = vst [vmem:[%s82] sm:$0xff] %v81
  %s84 = scalar_lea.vmem %s0, 168
  %v85 = vld [vmem:[%s84] sm:$0xff]
  %s86 = scalar_lea.vmem %s1, 168
  %87 = vst [vmem:[%s86] sm:$0xff] %v85
  %s88 = scalar_lea.vmem %s0, 40
  %v89 = vld [vmem:[%s88] sm:$0xff]
  %s90 = scalar_lea.vmem %s1, 72
  %91 = vst [vmem:[%s90] sm:$0xff] %v89
  %s92 = scalar_lea.vmem %s0, 152
  %v93 = vld [vmem:[%s92] sm:$0xff]
  %s94 = scalar_lea.vmem %s1, 184
  %95 = vst [vmem:[%s94] sm:$0xff] %v93
  %s96 = scalar_lea.vmem %s0, 24
  %v97 = vld [vmem:[%s96] sm:$0xff]
  %s98 = scalar_lea.vmem %s1, 88
  %99 = vst [vmem:[%s98] sm:$0xff] %v97
  %s100 = scalar_lea.vmem %s0, 136
  %v101 = vld [vmem:[%s100] sm:$0xff]
  %s102 = scalar_lea.vmem %s1, 200
  %103 = vst [vmem:[%s102] sm:$0xff] %v101
  %s104 = scalar_lea.vmem %s0, 8
  %v105 = vld [vmem:[%s104] sm:$0xff]
  %s106 = scalar_lea.vmem %s1, 104
  %107 = vst [vmem:[%s106] sm:$0xff] %v105
  %s108 = scalar_lea.vmem %s0, 120
  %v109 = vld [vmem:[%s108] sm:$0xff]
  %s110 = scalar_lea.vmem %s1, 216
  %111 = vst [vmem:[%s110] sm:$0xff] %v109

</llo_original>
